<compile_context>
chip_gen: v6e
topology: v6e:2x2x1
jax: 0.10.0
libtpu: 0.0.40
codegen_flags: <defaults>
</compile_context>

<pallas_src>
import functools

import jax
import jax.numpy as jnp
from jax.experimental import pallas as pl
from jax.experimental.pallas import tpu as pltpu

OUT_PAD = 128   # lane-dense output width (true logits live in lanes 0..2)


def _make_mlp_kernel(p: float, training: bool):
    use_dropout = training and p > 0.0
    inv_keep = 1.0 / (1.0 - p) if p < 1.0 else 0.0
    # integer keep-threshold: keep iff bits >= thr  =>  P(keep) = 1 - p
    thr = min(int(round(p * 4294967296.0)), 4294967295)

    def kernel(bits_ref, x_ref, w1_ref, b1_ref, w2_ref, b2_ref, w3_ref, b3_ref,
               o_ref):

        def linear_vpu(h, w_ref, b_ref):
            # Unrolled VPU FMA over the contraction dim (K <= 12); bias folded
            # into the first term.  h: (tile, K), w: (K, N), b: (1, N).
            in_dim = w_ref.shape[0]
            acc = h[:, 0:1] * w_ref[0:1, :] + b_ref[...]
            for k in range(1, in_dim):
                acc = acc + h[:, k:k + 1] * w_ref[k:k + 1, :]
            return acc

        def relu_dropout(h, layer):
            if use_dropout:
                bits = bits_ref[layer]                       # (tile, 12) uint32
                keep = jnp.logical_and(bits >= jnp.uint32(thr), h > 0.0)
                return jnp.where(keep, h * jnp.float32(inv_keep),
                                 jnp.float32(0.0))
            return jnp.maximum(h, 0.0)

        x = x_ref[...]
        h1 = relu_dropout(linear_vpu(x, w1_ref, b1_ref), 0)   # (tile, 12)
        h2 = relu_dropout(linear_vpu(h1, w2_ref, b2_ref), 1)  # (tile, 12)
        out = linear_vpu(h2, w3_ref, b3_ref)                  # (tile, 128)
        o_ref[...] = out.astype(o_ref.dtype)

    return kernel


@functools.partial(jax.jit, static_argnames=("dropout_rate", "training"))
def mlp_forward(x, params, key, *, dropout_rate: float, training: bool):
    """Pallas implementation of theModelClass.forward.

    Note: reusing the same `key` across training steps gives identical dropout
    masks; the caller should supply a fresh key per step.
    """
    w1, b1, w2, b2, w3, b3 = params
    n = x.shape[0]

    # Row tiling: multiple of 8 sublanes, capped at 512 rows per tile.
    if n > 512:
        tile = 512
    else:
        tile = ((n + 7) // 8) * 8
    padded_n = ((n + tile - 1) // tile) * tile
    grid = (padded_n // tile,)

    # Pad batch to the tiled size.
    x_p = jnp.zeros((padded_n, 4), jnp.float32).at[:n].set(x)

    # Lane-dense final layer: pad (12,3)/(1,3) -> (12,128)/(1,128) with zeros.
    w3p = jnp.zeros((12, OUT_PAD), jnp.float32).at[:, :3].set(w3)
    b3p = jnp.zeros((1, OUT_PAD), jnp.float32).at[:, :3].set(b3)

    # One random draw covering both dropout layers.
    if training and dropout_rate > 0.0:
        bits = jax.random.bits(key, (2, padded_n, 12), jnp.uint32)
    else:
        bits = jnp.zeros((2, padded_n, 12), jnp.uint32)

    kernel = _make_mlp_kernel(float(dropout_rate), bool(training))

    out = pl.pallas_call(
        kernel,
        out_shape=jax.ShapeDtypeStruct((padded_n, OUT_PAD), jnp.float32),
        grid=grid,
        in_specs=[
            pl.BlockSpec((2, tile, 12), lambda i: (0, i, 0)),   # dropout bits
            pl.BlockSpec((tile, 4), lambda i: (i, 0)),          # x rows
            pl.BlockSpec((4, 12), lambda i: (0, 0)),            # w1 (resident)
            pl.BlockSpec((1, 12), lambda i: (0, 0)),            # b1
            pl.BlockSpec((12, 12), lambda i: (0, 0)),           # w2
            pl.BlockSpec((1, 12), lambda i: (0, 0)),            # b2
            pl.BlockSpec((12, OUT_PAD), lambda i: (0, 0)),      # w3 (padded)
            pl.BlockSpec((1, OUT_PAD), lambda i: (0, 0)),       # b3 (padded)
        ],
        out_specs=pl.BlockSpec((tile, OUT_PAD), lambda i: (i, 0)),
        compiler_params=pltpu.CompilerParams(
            dimension_semantics=("parallel",)),
    )(bits, x_p, w1, b1, w2, b2, w3p, b3p)

    return out[:n, :3]


def init_params(key):
    """Deterministic init matching nn.Linear: U(-1/sqrt(fan_in), +1/sqrt(fan_in))."""
    def linear(k, fan_in, fan_out):
        kw, kb = jax.random.split(k)
        bound = 1.0 / jnp.sqrt(fan_in)
        w = jax.random.uniform(kw, (fan_in, fan_out), jnp.float32, -bound, bound)
        b = jax.random.uniform(kb, (1, fan_out), jnp.float32, -bound, bound)
        return w, b

    k1, k2, k3 = jax.random.split(key, 3)
    w1, b1 = linear(k1, 4, 12)
    w2, b2 = linear(k2, 12, 12)
    w3, b3 = linear(k3, 12, 3)
    return (w1, b1, w2, b2, w3, b3)


def mlp_reference_eval(x, params):
    """Pure-JAX reference for eval mode (dropout = identity)."""
    w1, b1, w2, b2, w3, b3 = params
    h = jnp.maximum(x @ w1 + b1, 0.0)
    h = jnp.maximum(h @ w2 + b2, 0.0)
    return h @ w3 + b3


if __name__ == "__main__":
    key = jax.random.PRNGKey(0)
    k_params, k_x, k_drop = jax.random.split(key, 3)

    params = init_params(k_params)
    batch = 8
    x = jax.random.normal(k_x, (batch, 4), jnp.float32)
    dropout_rate = 0.5

    # Eval mode (deterministic) — must match the pure-JAX reference.
    y_eval = mlp_forward(x, params, k_drop,
                         dropout_rate=dropout_rate, training=False)
    jax.block_until_ready(y_eval)
    y_ref = mlp_reference_eval(x, params)
    assert y_eval.shape == (batch, 3)
    assert jnp.allclose(y_eval, y_ref, atol=1e-5, rtol=1e-5)

    # Training with p=0.0 must also match the deterministic reference.
    y_p0 = mlp_forward(x, params, k_drop, dropout_rate=0.0, training=True)
    jax.block_until_ready(y_p0)
    assert jnp.allclose(y_p0, y_ref, atol=1e-5, rtol=1e-5)

    # Training with p=0.5: in-kernel integer-threshold dropout.
    y_train = mlp_forward(x, params, k_drop,
                          dropout_rate=dropout_rate, training=True)
    jax.block_until_ready(y_train)
    assert y_train.shape == (batch, 3)
    assert bool(jnp.all(jnp.isfinite(y_train)))

    print("KERNEL_OK")
</pallas_src>

<mosaic_0001>
module attributes {stable_mosaic.version = 11 : i64} {
  func.func @kernel(%arg0: i32, %arg1: memref<2x8x12xi32, #tpu.memory_space<vmem>>, %arg2: memref<8x4xf32, #tpu.memory_space<vmem>>, %arg3: memref<4x12xf32, #tpu.memory_space<vmem>>, %arg4: memref<1x12xf32, #tpu.memory_space<vmem>>, %arg5: memref<12x12xf32, #tpu.memory_space<vmem>>, %arg6: memref<1x12xf32, #tpu.memory_space<vmem>>, %arg7: memref<12x128xf32, #tpu.memory_space<vmem>>, %arg8: memref<1x128xf32, #tpu.memory_space<vmem>>, %arg9: memref<8x128xf32, #tpu.memory_space<vmem>>) attributes {dimension_semantics = [#tpu.dimension_semantics<parallel>], iteration_bounds = array<i64: 1>, scalar_prefetch = 0 : i64, scratch_operands = 0 : i64, tpu.core_type = #tpu.core_type<tc>, window_params = [{transform_indices = @transform_0, window_bounds = array<i64: 2, 8, 12>}, {transform_indices = @transform_1, window_bounds = array<i64: 8, 4>}, {pipeline_mode = #tpu.pipeline_mode<synchronous>, transform_indices = @transform_2, window_bounds = array<i64: 4, 12>}, {pipeline_mode = #tpu.pipeline_mode<synchronous>, transform_indices = @transform_3, window_bounds = array<i64: 1, 12>}, {pipeline_mode = #tpu.pipeline_mode<synchronous>, transform_indices = @transform_4, window_bounds = array<i64: 12, 12>}, {pipeline_mode = #tpu.pipeline_mode<synchronous>, transform_indices = @transform_5, window_bounds = array<i64: 1, 12>}, {pipeline_mode = #tpu.pipeline_mode<synchronous>, transform_indices = @transform_6, window_bounds = array<i64: 12, 128>}, {pipeline_mode = #tpu.pipeline_mode<synchronous>, transform_indices = @transform_7, window_bounds = array<i64: 1, 128>}, {transform_indices = @transform_8, window_bounds = array<i64: 8, 128>}]} {
    %c0 = arith.constant 0 : index
    %c0_0 = arith.constant 0 : index
    %0 = vector.load %arg2[%c0, %c0_0] : memref<8x4xf32, #tpu.memory_space<vmem>>, vector<8x4xf32>
    %1 = vector.extract_strided_slice %0 {offsets = [0, 0], sizes = [8, 1], strides = [1, 1]} : vector<8x4xf32> to vector<8x1xf32>
    %c0_1 = arith.constant 0 : index
    %c0_2 = arith.constant 0 : index
    %2 = vector.load %arg3[%c0_1, %c0_2] : memref<4x12xf32, #tpu.memory_space<vmem>>, vector<1x12xf32>
    %3 = vector.broadcast %1 : vector<8x1xf32> to vector<8x12xf32>
    %4 = vector.broadcast %2 : vector<1x12xf32> to vector<8x12xf32>
    %5 = arith.mulf %3, %4 : vector<8x12xf32>
    %c0_3 = arith.constant 0 : index
    %c0_4 = arith.constant 0 : index
    %6 = vector.load %arg4[%c0_3, %c0_4] : memref<1x12xf32, #tpu.memory_space<vmem>>, vector<1x12xf32>
    %7 = vector.broadcast %6 : vector<1x12xf32> to vector<8x12xf32>
    %8 = arith.addf %5, %7 : vector<8x12xf32>
    %9 = vector.extract_strided_slice %0 {offsets = [0, 1], sizes = [8, 1], strides = [1, 1]} : vector<8x4xf32> to vector<8x1xf32>
    %c1 = arith.constant 1 : index
    %c0_5 = arith.constant 0 : index
    %10 = vector.load %arg3[%c1, %c0_5] : memref<4x12xf32, #tpu.memory_space<vmem>>, vector<1x12xf32>
    %11 = vector.broadcast %9 : vector<8x1xf32> to vector<8x12xf32>
    %12 = vector.broadcast %10 : vector<1x12xf32> to vector<8x12xf32>
    %13 = arith.mulf %11, %12 : vector<8x12xf32>
    %14 = arith.addf %8, %13 : vector<8x12xf32>
    %15 = vector.extract_strided_slice %0 {offsets = [0, 2], sizes = [8, 1], strides = [1, 1]} : vector<8x4xf32> to vector<8x1xf32>
    %c2 = arith.constant 2 : index
    %c0_6 = arith.constant 0 : index
    %16 = vector.load %arg3[%c2, %c0_6] : memref<4x12xf32, #tpu.memory_space<vmem>>, vector<1x12xf32>
    %17 = vector.broadcast %15 : vector<8x1xf32> to vector<8x12xf32>
    %18 = vector.broadcast %16 : vector<1x12xf32> to vector<8x12xf32>
    %19 = arith.mulf %17, %18 : vector<8x12xf32>
    %20 = arith.addf %14, %19 : vector<8x12xf32>
    %21 = vector.extract_strided_slice %0 {offsets = [0, 3], sizes = [8, 1], strides = [1, 1]} : vector<8x4xf32> to vector<8x1xf32>
    %c3 = arith.constant 3 : index
    %c0_7 = arith.constant 0 : index
    %22 = vector.load %arg3[%c3, %c0_7] : memref<4x12xf32, #tpu.memory_space<vmem>>, vector<1x12xf32>
    %23 = vector.broadcast %21 : vector<8x1xf32> to vector<8x12xf32>
    %24 = vector.broadcast %22 : vector<1x12xf32> to vector<8x12xf32>
    %25 = arith.mulf %23, %24 : vector<8x12xf32>
    %26 = arith.addf %20, %25 : vector<8x12xf32>
    %cst = arith.constant 0.000000e+00 : f32
    %27 = vector.broadcast %cst : f32 to vector<8x12xf32>
    %28 = arith.maximumf %26, %27 : vector<8x12xf32>
    %29 = vector.extract_strided_slice %28 {offsets = [0, 0], sizes = [8, 1], strides = [1, 1]} : vector<8x12xf32> to vector<8x1xf32>
    %c0_8 = arith.constant 0 : index
    %c0_9 = arith.constant 0 : index
    %30 = vector.load %arg5[%c0_8, %c0_9] : memref<12x12xf32, #tpu.memory_space<vmem>>, vector<1x12xf32>
    %31 = vector.broadcast %29 : vector<8x1xf32> to vector<8x12xf32>
    %32 = vector.broadcast %30 : vector<1x12xf32> to vector<8x12xf32>
    %33 = arith.mulf %31, %32 : vector<8x12xf32>
    %c0_10 = arith.constant 0 : index
    %c0_11 = arith.constant 0 : index
    %34 = vector.load %arg6[%c0_10, %c0_11] : memref<1x12xf32, #tpu.memory_space<vmem>>, vector<1x12xf32>
    %35 = vector.broadcast %34 : vector<1x12xf32> to vector<8x12xf32>
    %36 = arith.addf %33, %35 : vector<8x12xf32>
    %37 = vector.extract_strided_slice %28 {offsets = [0, 1], sizes = [8, 1], strides = [1, 1]} : vector<8x12xf32> to vector<8x1xf32>
    %c1_12 = arith.constant 1 : index
    %c0_13 = arith.constant 0 : index
    %38 = vector.load %arg5[%c1_12, %c0_13] : memref<12x12xf32, #tpu.memory_space<vmem>>, vector<1x12xf32>
    %39 = vector.broadcast %37 : vector<8x1xf32> to vector<8x12xf32>
    %40 = vector.broadcast %38 : vector<1x12xf32> to vector<8x12xf32>
    %41 = arith.mulf %39, %40 : vector<8x12xf32>
    %42 = arith.addf %36, %41 : vector<8x12xf32>
    %43 = vector.extract_strided_slice %28 {offsets = [0, 2], sizes = [8, 1], strides = [1, 1]} : vector<8x12xf32> to vector<8x1xf32>
    %c2_14 = arith.constant 2 : index
    %c0_15 = arith.constant 0 : index
    %44 = vector.load %arg5[%c2_14, %c0_15] : memref<12x12xf32, #tpu.memory_space<vmem>>, vector<1x12xf32>
    %45 = vector.broadcast %43 : vector<8x1xf32> to vector<8x12xf32>
    %46 = vector.broadcast %44 : vector<1x12xf32> to vector<8x12xf32>
    %47 = arith.mulf %45, %46 : vector<8x12xf32>
    %48 = arith.addf %42, %47 : vector<8x12xf32>
    %49 = vector.extract_strided_slice %28 {offsets = [0, 3], sizes = [8, 1], strides = [1, 1]} : vector<8x12xf32> to vector<8x1xf32>
    %c3_16 = arith.constant 3 : index
    %c0_17 = arith.constant 0 : index
    %50 = vector.load %arg5[%c3_16, %c0_17] : memref<12x12xf32, #tpu.memory_space<vmem>>, vector<1x12xf32>
    %51 = vector.broadcast %49 : vector<8x1xf32> to vector<8x12xf32>
    %52 = vector.broadcast %50 : vector<1x12xf32> to vector<8x12xf32>
    %53 = arith.mulf %51, %52 : vector<8x12xf32>
    %54 = arith.addf %48, %53 : vector<8x12xf32>
    %55 = vector.extract_strided_slice %28 {offsets = [0, 4], sizes = [8, 1], strides = [1, 1]} : vector<8x12xf32> to vector<8x1xf32>
    %c4 = arith.constant 4 : index
    %c0_18 = arith.constant 0 : index
    %56 = vector.load %arg5[%c4, %c0_18] : memref<12x12xf32, #tpu.memory_space<vmem>>, vector<1x12xf32>
    %57 = vector.broadcast %55 : vector<8x1xf32> to vector<8x12xf32>
    %58 = vector.broadcast %56 : vector<1x12xf32> to vector<8x12xf32>
    %59 = arith.mulf %57, %58 : vector<8x12xf32>
    %60 = arith.addf %54, %59 : vector<8x12xf32>
    %61 = vector.extract_strided_slice %28 {offsets = [0, 5], sizes = [8, 1], strides = [1, 1]} : vector<8x12xf32> to vector<8x1xf32>
    %c5 = arith.constant 5 : index
    %c0_19 = arith.constant 0 : index
    %62 = vector.load %arg5[%c5, %c0_19] : memref<12x12xf32, #tpu.memory_space<vmem>>, vector<1x12xf32>
    %63 = vector.broadcast %61 : vector<8x1xf32> to vector<8x12xf32>
    %64 = vector.broadcast %62 : vector<1x12xf32> to vector<8x12xf32>
    %65 = arith.mulf %63, %64 : vector<8x12xf32>
    %66 = arith.addf %60, %65 : vector<8x12xf32>
    %67 = vector.extract_strided_slice %28 {offsets = [0, 6], sizes = [8, 1], strides = [1, 1]} : vector<8x12xf32> to vector<8x1xf32>
    %c6 = arith.constant 6 : index
    %c0_20 = arith.constant 0 : index
    %68 = vector.load %arg5[%c6, %c0_20] : memref<12x12xf32, #tpu.memory_space<vmem>>, vector<1x12xf32>
    %69 = vector.broadcast %67 : vector<8x1xf32> to vector<8x12xf32>
    %70 = vector.broadcast %68 : vector<1x12xf32> to vector<8x12xf32>
    %71 = arith.mulf %69, %70 : vector<8x12xf32>
    %72 = arith.addf %66, %71 : vector<8x12xf32>
    %73 = vector.extract_strided_slice %28 {offsets = [0, 7], sizes = [8, 1], strides = [1, 1]} : vector<8x12xf32> to vector<8x1xf32>
    %c7 = arith.constant 7 : index
    %c0_21 = arith.constant 0 : index
    %74 = vector.load %arg5[%c7, %c0_21] : memref<12x12xf32, #tpu.memory_space<vmem>>, vector<1x12xf32>
    %75 = vector.broadcast %73 : vector<8x1xf32> to vector<8x12xf32>
    %76 = vector.broadcast %74 : vector<1x12xf32> to vector<8x12xf32>
    %77 = arith.mulf %75, %76 : vector<8x12xf32>
    %78 = arith.addf %72, %77 : vector<8x12xf32>
    %79 = vector.extract_strided_slice %28 {offsets = [0, 8], sizes = [8, 1], strides = [1, 1]} : vector<8x12xf32> to vector<8x1xf32>
    %c8 = arith.constant 8 : index
    %c0_22 = arith.constant 0 : index
    %80 = vector.load %arg5[%c8, %c0_22] : memref<12x12xf32, #tpu.memory_space<vmem>>, vector<1x12xf32>
    %81 = vector.broadcast %79 : vector<8x1xf32> to vector<8x12xf32>
    %82 = vector.broadcast %80 : vector<1x12xf32> to vector<8x12xf32>
    %83 = arith.mulf %81, %82 : vector<8x12xf32>
    %84 = arith.addf %78, %83 : vector<8x12xf32>
    %85 = vector.extract_strided_slice %28 {offsets = [0, 9], sizes = [8, 1], strides = [1, 1]} : vector<8x12xf32> to vector<8x1xf32>
    %c9 = arith.constant 9 : index
    %c0_23 = arith.constant 0 : index
    %86 = vector.load %arg5[%c9, %c0_23] : memref<12x12xf32, #tpu.memory_space<vmem>>, vector<1x12xf32>
    %87 = vector.broadcast %85 : vector<8x1xf32> to vector<8x12xf32>
    %88 = vector.broadcast %86 : vector<1x12xf32> to vector<8x12xf32>
    %89 = arith.mulf %87, %88 : vector<8x12xf32>
    %90 = arith.addf %84, %89 : vector<8x12xf32>
    %91 = vector.extract_strided_slice %28 {offsets = [0, 10], sizes = [8, 1], strides = [1, 1]} : vector<8x12xf32> to vector<8x1xf32>
    %c10 = arith.constant 10 : index
    %c0_24 = arith.constant 0 : index
    %92 = vector.load %arg5[%c10, %c0_24] : memref<12x12xf32, #tpu.memory_space<vmem>>, vector<1x12xf32>
    %93 = vector.broadcast %91 : vector<8x1xf32> to vector<8x12xf32>
    %94 = vector.broadcast %92 : vector<1x12xf32> to vector<8x12xf32>
    %95 = arith.mulf %93, %94 : vector<8x12xf32>
    %96 = arith.addf %90, %95 : vector<8x12xf32>
    %97 = vector.extract_strided_slice %28 {offsets = [0, 11], sizes = [8, 1], strides = [1, 1]} : vector<8x12xf32> to vector<8x1xf32>
    %c11 = arith.constant 11 : index
    %c0_25 = arith.constant 0 : index
    %98 = vector.load %arg5[%c11, %c0_25] : memref<12x12xf32, #tpu.memory_space<vmem>>, vector<1x12xf32>
    %99 = vector.broadcast %97 : vector<8x1xf32> to vector<8x12xf32>
    %100 = vector.broadcast %98 : vector<1x12xf32> to vector<8x12xf32>
    %101 = arith.mulf %99, %100 : vector<8x12xf32>
    %102 = arith.addf %96, %101 : vector<8x12xf32>
    %cst_26 = arith.constant 0.000000e+00 : f32
    %103 = vector.broadcast %cst_26 : f32 to vector<8x12xf32>
    %104 = arith.maximumf %102, %103 : vector<8x12xf32>
    %105 = vector.extract_strided_slice %104 {offsets = [0, 0], sizes = [8, 1], strides = [1, 1]} : vector<8x12xf32> to vector<8x1xf32>
    %c0_27 = arith.constant 0 : index
    %c0_28 = arith.constant 0 : index
    %106 = vector.load %arg7[%c0_27, %c0_28] : memref<12x128xf32, #tpu.memory_space<vmem>>, vector<1x128xf32>
    %107 = vector.broadcast %105 : vector<8x1xf32> to vector<8x128xf32>
    %108 = vector.broadcast %106 : vector<1x128xf32> to vector<8x128xf32>
    %109 = arith.mulf %107, %108 : vector<8x128xf32>
    %c0_29 = arith.constant 0 : index
    %c0_30 = arith.constant 0 : index
    %110 = vector.load %arg8[%c0_29, %c0_30] : memref<1x128xf32, #tpu.memory_space<vmem>>, vector<1x128xf32>
    %111 = vector.broadcast %110 : vector<1x128xf32> to vector<8x128xf32>
    %112 = arith.addf %109, %111 : vector<8x128xf32>
    %113 = vector.extract_strided_slice %104 {offsets = [0, 1], sizes = [8, 1], strides = [1, 1]} : vector<8x12xf32> to vector<8x1xf32>
    %c1_31 = arith.constant 1 : index
    %c0_32 = arith.constant 0 : index
    %114 = vector.load %arg7[%c1_31, %c0_32] : memref<12x128xf32, #tpu.memory_space<vmem>>, vector<1x128xf32>
    %115 = vector.broadcast %113 : vector<8x1xf32> to vector<8x128xf32>
    %116 = vector.broadcast %114 : vector<1x128xf32> to vector<8x128xf32>
    %117 = arith.mulf %115, %116 : vector<8x128xf32>
    %118 = arith.addf %112, %117 : vector<8x128xf32>
    %119 = vector.extract_strided_slice %104 {offsets = [0, 2], sizes = [8, 1], strides = [1, 1]} : vector<8x12xf32> to vector<8x1xf32>
    %c2_33 = arith.constant 2 : index
    %c0_34 = arith.constant 0 : index
    %120 = vector.load %arg7[%c2_33, %c0_34] : memref<12x128xf32, #tpu.memory_space<vmem>>, vector<1x128xf32>
    %121 = vector.broadcast %119 : vector<8x1xf32> to vector<8x128xf32>
    %122 = vector.broadcast %120 : vector<1x128xf32> to vector<8x128xf32>
    %123 = arith.mulf %121, %122 : vector<8x128xf32>
    %124 = arith.addf %118, %123 : vector<8x128xf32>
    %125 = vector.extract_strided_slice %104 {offsets = [0, 3], sizes = [8, 1], strides = [1, 1]} : vector<8x12xf32> to vector<8x1xf32>
    %c3_35 = arith.constant 3 : index
    %c0_36 = arith.constant 0 : index
    %126 = vector.load %arg7[%c3_35, %c0_36] : memref<12x128xf32, #tpu.memory_space<vmem>>, vector<1x128xf32>
    %127 = vector.broadcast %125 : vector<8x1xf32> to vector<8x128xf32>
    %128 = vector.broadcast %126 : vector<1x128xf32> to vector<8x128xf32>
    %129 = arith.mulf %127, %128 : vector<8x128xf32>
    %130 = arith.addf %124, %129 : vector<8x128xf32>
    %131 = vector.extract_strided_slice %104 {offsets = [0, 4], sizes = [8, 1], strides = [1, 1]} : vector<8x12xf32> to vector<8x1xf32>
    %c4_37 = arith.constant 4 : index
    %c0_38 = arith.constant 0 : index
    %132 = vector.load %arg7[%c4_37, %c0_38] : memref<12x128xf32, #tpu.memory_space<vmem>>, vector<1x128xf32>
    %133 = vector.broadcast %131 : vector<8x1xf32> to vector<8x128xf32>
    %134 = vector.broadcast %132 : vector<1x128xf32> to vector<8x128xf32>
    %135 = arith.mulf %133, %134 : vector<8x128xf32>
    %136 = arith.addf %130, %135 : vector<8x128xf32>
    %137 = vector.extract_strided_slice %104 {offsets = [0, 5], sizes = [8, 1], strides = [1, 1]} : vector<8x12xf32> to vector<8x1xf32>
    %c5_39 = arith.constant 5 : index
    %c0_40 = arith.constant 0 : index
    %138 = vector.load %arg7[%c5_39, %c0_40] : memref<12x128xf32, #tpu.memory_space<vmem>>, vector<1x128xf32>
    %139 = vector.broadcast %137 : vector<8x1xf32> to vector<8x128xf32>
    %140 = vector.broadcast %138 : vector<1x128xf32> to vector<8x128xf32>
    %141 = arith.mulf %139, %140 : vector<8x128xf32>
    %142 = arith.addf %136, %141 : vector<8x128xf32>
    %143 = vector.extract_strided_slice %104 {offsets = [0, 6], sizes = [8, 1], strides = [1, 1]} : vector<8x12xf32> to vector<8x1xf32>
    %c6_41 = arith.constant 6 : index
    %c0_42 = arith.constant 0 : index
    %144 = vector.load %arg7[%c6_41, %c0_42] : memref<12x128xf32, #tpu.memory_space<vmem>>, vector<1x128xf32>
    %145 = vector.broadcast %143 : vector<8x1xf32> to vector<8x128xf32>
    %146 = vector.broadcast %144 : vector<1x128xf32> to vector<8x128xf32>
    %147 = arith.mulf %145, %146 : vector<8x128xf32>
    %148 = arith.addf %142, %147 : vector<8x128xf32>
    %149 = vector.extract_strided_slice %104 {offsets = [0, 7], sizes = [8, 1], strides = [1, 1]} : vector<8x12xf32> to vector<8x1xf32>
    %c7_43 = arith.constant 7 : index
    %c0_44 = arith.constant 0 : index
    %150 = vector.load %arg7[%c7_43, %c0_44] : memref<12x128xf32, #tpu.memory_space<vmem>>, vector<1x128xf32>
    %151 = vector.broadcast %149 : vector<8x1xf32> to vector<8x128xf32>
    %152 = vector.broadcast %150 : vector<1x128xf32> to vector<8x128xf32>
    %153 = arith.mulf %151, %152 : vector<8x128xf32>
    %154 = arith.addf %148, %153 : vector<8x128xf32>
    %155 = vector.extract_strided_slice %104 {offsets = [0, 8], sizes = [8, 1], strides = [1, 1]} : vector<8x12xf32> to vector<8x1xf32>
    %c8_45 = arith.constant 8 : index
    %c0_46 = arith.constant 0 : index
    %156 = vector.load %arg7[%c8_45, %c0_46] : memref<12x128xf32, #tpu.memory_space<vmem>>, vector<1x128xf32>
    %157 = vector.broadcast %155 : vector<8x1xf32> to vector<8x128xf32>
    %158 = vector.broadcast %156 : vector<1x128xf32> to vector<8x128xf32>
    %159 = arith.mulf %157, %158 : vector<8x128xf32>
    %160 = arith.addf %154, %159 : vector<8x128xf32>
    %161 = vector.extract_strided_slice %104 {offsets = [0, 9], sizes = [8, 1], strides = [1, 1]} : vector<8x12xf32> to vector<8x1xf32>
    %c9_47 = arith.constant 9 : index
    %c0_48 = arith.constant 0 : index
    %162 = vector.load %arg7[%c9_47, %c0_48] : memref<12x128xf32, #tpu.memory_space<vmem>>, vector<1x128xf32>
    %163 = vector.broadcast %161 : vector<8x1xf32> to vector<8x128xf32>
    %164 = vector.broadcast %162 : vector<1x128xf32> to vector<8x128xf32>
    %165 = arith.mulf %163, %164 : vector<8x128xf32>
    %166 = arith.addf %160, %165 : vector<8x128xf32>
    %167 = vector.extract_strided_slice %104 {offsets = [0, 10], sizes = [8, 1], strides = [1, 1]} : vector<8x12xf32> to vector<8x1xf32>
    %c10_49 = arith.constant 10 : index
    %c0_50 = arith.constant 0 : index
    %168 = vector.load %arg7[%c10_49, %c0_50] : memref<12x128xf32, #tpu.memory_space<vmem>>, vector<1x128xf32>
    %169 = vector.broadcast %167 : vector<8x1xf32> to vector<8x128xf32>
    %170 = vector.broadcast %168 : vector<1x128xf32> to vector<8x128xf32>
    %171 = arith.mulf %169, %170 : vector<8x128xf32>
    %172 = arith.addf %166, %171 : vector<8x128xf32>
    %173 = vector.extract_strided_slice %104 {offsets = [0, 11], sizes = [8, 1], strides = [1, 1]} : vector<8x12xf32> to vector<8x1xf32>
    %c11_51 = arith.constant 11 : index
    %c0_52 = arith.constant 0 : index
    %174 = vector.load %arg7[%c11_51, %c0_52] : memref<12x128xf32, #tpu.memory_space<vmem>>, vector<1x128xf32>
    %175 = vector.broadcast %173 : vector<8x1xf32> to vector<8x128xf32>
    %176 = vector.broadcast %174 : vector<1x128xf32> to vector<8x128xf32>
    %177 = arith.mulf %175, %176 : vector<8x128xf32>
    %178 = arith.addf %172, %177 : vector<8x128xf32>
    %c0_53 = arith.constant 0 : index
    %c0_54 = arith.constant 0 : index
    %179 = vector.load %arg9[%c0_53, %c0_54] : memref<8x128xf32, #tpu.memory_space<vmem>>, vector<8x128xf32>
    tpu.vector_store %arg9[%c0_53, %c0_54], %178 {strides = array<i32>} : memref<8x128xf32, #tpu.memory_space<vmem>>, vector<8x128xf32>,
    return
  }
  func.func @transform_0(%arg0: i32) -> (i32, i32, i32) {
    %c0_i32 = arith.constant 0 : i32
    %c0_i32_0 = arith.constant 0 : i32
    %c0_i32_1 = arith.constant 0 : i32
    return %c0_i32, %arg0, %c0_i32_0 : i32, i32, i32
  }
  func.func @transform_1(%arg0: i32) -> (i32, i32) {
    %c0_i32 = arith.constant 0 : i32
    %c0_i32_0 = arith.constant 0 : i32
    return %arg0, %c0_i32 : i32, i32
  }
  func.func @transform_2(%arg0: i32) -> (i32, i32) {
    %c0_i32 = arith.constant 0 : i32
    %c0_i32_0 = arith.constant 0 : i32
    %c0_i32_1 = arith.constant 0 : i32
    return %c0_i32, %c0_i32_0 : i32, i32
  }
  func.func @transform_3(%arg0: i32) -> (i32, i32) {
    %c0_i32 = arith.constant 0 : i32
    %c0_i32_0 = arith.constant 0 : i32
    %c0_i32_1 = arith.constant 0 : i32
    return %c0_i32, %c0_i32_0 : i32, i32
  }
  func.func @transform_4(%arg0: i32) -> (i32, i32) {
    %c0_i32 = arith.constant 0 : i32
    %c0_i32_0 = arith.constant 0 : i32
    %c0_i32_1 = arith.constant 0 : i32
    return %c0_i32, %c0_i32_0 : i32, i32
  }
  func.func @transform_5(%arg0: i32) -> (i32, i32) {
    %c0_i32 = arith.constant 0 : i32
    %c0_i32_0 = arith.constant 0 : i32
    %c0_i32_1 = arith.constant 0 : i32
    return %c0_i32, %c0_i32_0 : i32, i32
  }
  func.func @transform_6(%arg0: i32) -> (i32, i32) {
    %c0_i32 = arith.constant 0 : i32
    %c0_i32_0 = arith.constant 0 : i32
    %c0_i32_1 = arith.constant 0 : i32
    return %c0_i32, %c0_i32_0 : i32, i32
  }
  func.func @transform_7(%arg0: i32) -> (i32, i32) {
    %c0_i32 = arith.constant 0 : i32
    %c0_i32_0 = arith.constant 0 : i32
    %c0_i32_1 = arith.constant 0 : i32
    return %c0_i32, %c0_i32_0 : i32, i32
  }
  func.func @transform_8(%arg0: i32) -> (i32, i32) {
    %c0_i32 = arith.constant 0 : i32
    %c0_i32_0 = arith.constant 0 : i32
    return %arg0, %c0_i32 : i32, i32
  }
}

</mosaic_0001>

<llo_original>
// kernel: mlp_forward.1
$region0: #{mlp_forward.1}
  #allocation0 [shape = 'u32[]', space=smem, size = 0x4, offset = 0x4, fixed_abs, tag = 'smem constant byte address 0x4 - core index']
  #allocation1 [shape = 'u32[144,128]{1,0:T(1,128)}', space=vmem, size = 0x12000, scoped, tag = 'internal scratch']
  %s0 = inlined_call_operand.vmem [shape: u32[2,8,12], index: 0, kind: input, shape index: {}]
  %s1 = inlined_call_operand.vmem [shape: f32[8,4], index: 1, kind: input, shape index: {}]
  %s2 = inlined_call_operand.vmem [shape: f32[4,12], index: 2, kind: input, shape index: {}]
  %s3 = inlined_call_operand.vmem [shape: f32[1,12], index: 3, kind: input, shape index: {}]
  %s4 = inlined_call_operand.vmem [shape: f32[12,12], index: 4, kind: input, shape index: {}]
  %s5 = inlined_call_operand.vmem [shape: f32[1,12], index: 5, kind: input, shape index: {}]
  %s6 = inlined_call_operand.vmem [shape: f32[12,128], index: 6, kind: input, shape index: {}]
  %s7 = inlined_call_operand.vmem [shape: f32[1,128], index: 7, kind: input, shape index: {}]
  %s8 = inlined_call_operand.vmem [shape: f32[8,128], index: 8, kind: output, shape index: {}]
  %s9 = sld [smem:[#allocation0]]
  $region42: #{mlp_forward.1} parent=0
    _
  %s11 = ssub.s32 1, %s9
  %s12 = scalar_select 0, %s11, %s9
  // Predicated region
  $region2: #{mlp_forward.1} parent=0 // pred_check
    _
  $region3: #{mlp_forward.1} parent=0 // pred_check_branch
    %14 = sbr.rel (0) target = $region5
  $region4: #{mlp_forward.1} parent=0 // pred_region
    _
  $region5: #{mlp_forward.1} parent=0 // pred_fallthru
    _
  // Predicated region
  $region6: #{mlp_forward.1} parent=0 // pred_check
    _
  $region7: #{mlp_forward.1} parent=0 // pred_check_branch
    %16 = sbr.rel (0) target = $region9
  $region8: #{mlp_forward.1} parent=0 // pred_region
    _
  $region9: #{mlp_forward.1} parent=0 // pred_fallthru
    _
  // Predicated region
  $region10: #{mlp_forward.1} parent=0 // pred_check
    _
  $region11: #{mlp_forward.1} parent=0 // pred_check_branch
    %18 = sbr.rel (0) target = $region13
  $region12: #{mlp_forward.1} parent=0 // pred_region
    _
  $region13: #{mlp_forward.1} parent=0 // pred_fallthru
    _
  // Predicated region
  $region14: #{mlp_forward.1} parent=0 // pred_check
    _
  $region15: #{mlp_forward.1} parent=0 // pred_check_branch
    %20 = sbr.rel (0) target = $region17
  $region16: #{mlp_forward.1} parent=0 // pred_region
    _
  $region17: #{mlp_forward.1} parent=0 // pred_fallthru
    _
  // Predicated region
  $region18: #{mlp_forward.1} parent=0 // pred_check
    _
  $region19: #{mlp_forward.1} parent=0 // pred_check_branch
    %22 = sbr.rel (0) target = $region21
  $region20: #{mlp_forward.1} parent=0 // pred_region
    _
  $region21: #{mlp_forward.1} parent=0 // pred_fallthru
    _
  // Predicated region
  $region22: #{mlp_forward.1} parent=0 // pred_check
    _
  $region23: #{mlp_forward.1} parent=0 // pred_check_branch
    %24 = sbr.rel (0) target = $region25
  $region24: #{mlp_forward.1} parent=0 // pred_region
    _
  $region25: #{mlp_forward.1} parent=0 // pred_fallthru
    _
  // Predicated region
  $region26: #{mlp_forward.1} parent=0 // pred_check
    _
  $region27: #{mlp_forward.1} parent=0 // pred_check_branch
    %26 = sbr.rel (0) target = $region29
  $region28: #{mlp_forward.1} parent=0 // pred_region
    _
  $region29: #{mlp_forward.1} parent=0 // pred_fallthru
    _
  // Predicated region
  $region30: #{mlp_forward.1} parent=0 // pred_check
    _
  $region31: #{mlp_forward.1} parent=0 // pred_check_branch
    %28 = sbr.rel (0) target = $region33
  $region32: #{mlp_forward.1} parent=0 // pred_region
    _
  $region33: #{mlp_forward.1} parent=0 // pred_fallthru
    _
  %v29 = vld [vmem:[%s1] sm:$0xff]
  %v30 = vld [vmem:[%s2] sm:$0x1]
  %32 = vset.pattern.permute.xlu0 0
  %33 = vperm.xlu0 %32, %v29
  %v34 = vpop.permute.xlu0 %33
  %v36 = vlaneseq
  %v37 = vshrl.u32 %v36, 7
  %v38 = vsub.s32 0, %v37
  %v39 = vrot.slane %v30, %v38
  %v40 = vmul.f32 %v34, %v39
  %v41 = vld [vmem:[%s3] sm:$0x1]
  %v43 = vlaneseq
  %v44 = vshrl.u32 %v43, 7
  %v45 = vsub.s32 0, %v44
  %v46 = vrot.slane %v41, %v45
  %v48 = vadd.f32 %v40, %v46
  %v49 = vld [vmem:[%s2 + $0x1] sm:$0x1]
  %50 = vset.pattern.permute.xlu0 1
  %51 = vperm.xlu0 %50, %v29
  %v52 = vpop.permute.xlu0 %51
  %v54 = vlaneseq
  %v55 = vshrl.u32 %v54, 7
  %v56 = vsub.s32 0, %v55
  %v57 = vrot.slane %v49, %v56
  %v58 = vmul.f32 %v52, %v57
  %v59 = vadd.f32 %v48, %v58
  %v60 = vld [vmem:[%s2 + $0x2] sm:$0x1]
  %61 = vset.pattern.permute.xlu0 2
  %62 = vperm.xlu0 %61, %v29
  %v63 = vpop.permute.xlu0 %62
  %v65 = vlaneseq
  %v66 = vshrl.u32 %v65, 7
  %v67 = vsub.s32 0, %v66
  %v68 = vrot.slane %v60, %v67
  %v69 = vmul.f32 %v63, %v68
  %v70 = vadd.f32 %v59, %v69
  %v71 = vld [vmem:[%s2 + $0x3] sm:$0x1]
  %72 = vset.pattern.permute.xlu0 3
  %73 = vperm.xlu0 %72, %v29
  %v74 = vpop.permute.xlu0 %73
  %v76 = vlaneseq
  %v77 = vshrl.u32 %v76, 7
  %v78 = vsub.s32 0, %v77
  %v79 = vrot.slane %v71, %v78
  %v80 = vmul.f32 %v74, %v79
  %v81 = vadd.f32 %v70, %v80
  %v82 = vmax.f32 %v81, 0.0
  %v83 = vld [vmem:[%s4] sm:$0x1]
  %85 = vset.pattern.permute.xlu0 0
  %86 = vperm.xlu0 %85, %v82
  %v87 = vpop.permute.xlu0 %86
  %v89 = vlaneseq
  %v90 = vshrl.u32 %v89, 7
  %v91 = vsub.s32 0, %v90
  %v92 = vrot.slane %v83, %v91
  %v93 = vmul.f32 %v87, %v92
  %v94 = vld [vmem:[%s5] sm:$0x1]
  %v96 = vlaneseq
  %v97 = vshrl.u32 %v96, 7
  %v98 = vsub.s32 0, %v97
  %v99 = vrot.slane %v94, %v98
  %v101 = vadd.f32 %v93, %v99
  %v102 = vld [vmem:[%s4 + $0x1] sm:$0x1]
  %103 = vset.pattern.permute.xlu0 1
  %104 = vperm.xlu0 %103, %v82
  %v105 = vpop.permute.xlu0 %104
  %v107 = vlaneseq
  %v108 = vshrl.u32 %v107, 7
  %v109 = vsub.s32 0, %v108
  %v110 = vrot.slane %v102, %v109
  %v111 = vmul.f32 %v105, %v110
  %v112 = vadd.f32 %v101, %v111
  %v113 = vld [vmem:[%s4 + $0x2] sm:$0x1]
  %114 = vset.pattern.permute.xlu0 2
  %115 = vperm.xlu0 %114, %v82
  %v116 = vpop.permute.xlu0 %115
  %v118 = vlaneseq
  %v119 = vshrl.u32 %v118, 7
  %v120 = vsub.s32 0, %v119
  %v121 = vrot.slane %v113, %v120
  %v122 = vmul.f32 %v116, %v121
  %v123 = vadd.f32 %v112, %v122
  %v124 = vld [vmem:[%s4 + $0x3] sm:$0x1]
  %125 = vset.pattern.permute.xlu0 3
  %126 = vperm.xlu0 %125, %v82
  %v127 = vpop.permute.xlu0 %126
  %v129 = vlaneseq
  %v130 = vshrl.u32 %v129, 7
  %v131 = vsub.s32 0, %v130
  %v132 = vrot.slane %v124, %v131
  %v133 = vmul.f32 %v127, %v132
  %v134 = vadd.f32 %v123, %v133
  %v135 = vld [vmem:[%s4 + $0x4] sm:$0x1]
  %136 = vset.pattern.permute.xlu0 4
  %137 = vperm.xlu0 %136, %v82
  %v138 = vpop.permute.xlu0 %137
  %v140 = vlaneseq
  %v141 = vshrl.u32 %v140, 7
  %v142 = vsub.s32 0, %v141
  %v143 = vrot.slane %v135, %v142
  %v144 = vmul.f32 %v138, %v143
  %v145 = vadd.f32 %v134, %v144
  %v146 = vld [vmem:[%s4 + $0x5] sm:$0x1]
  %147 = vset.pattern.permute.xlu0 5
  %148 = vperm.xlu0 %147, %v82
  %v149 = vpop.permute.xlu0 %148
  %v151 = vlaneseq
  %v152 = vshrl.u32 %v151, 7
  %v153 = vsub.s32 0, %v152
  %v154 = vrot.slane %v146, %v153
  %v155 = vmul.f32 %v149, %v154
  %v156 = vadd.f32 %v145, %v155
  %v157 = vld [vmem:[%s4 + $0x6] sm:$0x1]
  %158 = vset.pattern.permute.xlu0 6
  %159 = vperm.xlu0 %158, %v82
  %v160 = vpop.permute.xlu0 %159
  %v162 = vlaneseq
  %v163 = vshrl.u32 %v162, 7
  %v164 = vsub.s32 0, %v163
  %v165 = vrot.slane %v157, %v164
  %v166 = vmul.f32 %v160, %v165
  %v167 = vadd.f32 %v156, %v166
  %v168 = vld [vmem:[%s4 + $0x7] sm:$0x1]
  %169 = vset.pattern.permute.xlu0 7
  %170 = vperm.xlu0 %169, %v82
  %v171 = vpop.permute.xlu0 %170
  %v173 = vlaneseq
  %v174 = vshrl.u32 %v173, 7
  %v175 = vsub.s32 0, %v174
  %v176 = vrot.slane %v168, %v175
  %v177 = vmul.f32 %v171, %v176
  %v178 = vadd.f32 %v167, %v177
  %v179 = vld [vmem:[%s4 + $0x8] sm:$0x1]
  %180 = vset.pattern.permute.xlu0 8
  %181 = vperm.xlu0 %180, %v82
  %v182 = vpop.permute.xlu0 %181
  %v184 = vlaneseq
  %v185 = vshrl.u32 %v184, 7
  %v186 = vsub.s32 0, %v185
  %v187 = vrot.slane %v179, %v186
  %v188 = vmul.f32 %v182, %v187
  %v189 = vadd.f32 %v178, %v188
  %v190 = vld [vmem:[%s4 + $0x9] sm:$0x1]
  %191 = vset.pattern.permute.xlu0 9
  %192 = vperm.xlu0 %191, %v82
  %v193 = vpop.permute.xlu0 %192
  %v195 = vlaneseq
  %v196 = vshrl.u32 %v195, 7
  %v197 = vsub.s32 0, %v196
  %v198 = vrot.slane %v190, %v197
  %v199 = vmul.f32 %v193, %v198
  %v200 = vadd.f32 %v189, %v199
  %v201 = vld [vmem:[%s4 + $0xa] sm:$0x1]
  %202 = vset.pattern.permute.xlu0 10
  %203 = vperm.xlu0 %202, %v82
  %v204 = vpop.permute.xlu0 %203
  %v206 = vlaneseq
  %v207 = vshrl.u32 %v206, 7
  %v208 = vsub.s32 0, %v207
  %v209 = vrot.slane %v201, %v208
  %v210 = vmul.f32 %v204, %v209
  %v211 = vadd.f32 %v200, %v210
  %v212 = vld [vmem:[%s4 + $0xb] sm:$0x1]
  %213 = vset.pattern.permute.xlu0 11
  %214 = vperm.xlu0 %213, %v82
  %v215 = vpop.permute.xlu0 %214
  %v217 = vlaneseq
  %v218 = vshrl.u32 %v217, 7
  %v219 = vsub.s32 0, %v218
  %v220 = vrot.slane %v212, %v219
  %v221 = vmul.f32 %v215, %v220
  %v222 = vadd.f32 %v211, %v221
  %v223 = vmax.f32 %v222, 0.0
  %v224 = vld [vmem:[%s6] sm:$0x1]
  %226 = vset.pattern.permute.xlu0 0
  %227 = vperm.xlu0 %226, %v223
  %v228 = vpop.permute.xlu0 %227
  %v230 = vlaneseq
  %v231 = vshrl.u32 %v230, 7
  %v232 = vsub.s32 0, %v231
  %v233 = vrot.slane %v224, %v232
  %v234 = vmul.f32 %v228, %v233
  %v235 = vld [vmem:[%s7] sm:$0x1]
  %v237 = vlaneseq
  %v238 = vshrl.u32 %v237, 7
  %v239 = vsub.s32 0, %v238
  %v240 = vrot.slane %v235, %v239
  %v242 = vadd.f32 %v234, %v240
  %v243 = vld [vmem:[%s6 + $0x1] sm:$0x1]
  %244 = vset.pattern.permute.xlu0 1
  %245 = vperm.xlu0 %244, %v223
  %v246 = vpop.permute.xlu0 %245
  %v248 = vlaneseq
  %v249 = vshrl.u32 %v248, 7
  %v250 = vsub.s32 0, %v249
  %v251 = vrot.slane %v243, %v250
  %v252 = vmul.f32 %v246, %v251
  %v253 = vadd.f32 %v242, %v252
  %v254 = vld [vmem:[%s6 + $0x2] sm:$0x1]
  %255 = vset.pattern.permute.xlu0 2
  %256 = vperm.xlu0 %255, %v223
  %v257 = vpop.permute.xlu0 %256
  %v259 = vlaneseq
  %v260 = vshrl.u32 %v259, 7
  %v261 = vsub.s32 0, %v260
  %v262 = vrot.slane %v254, %v261
  %v263 = vmul.f32 %v257, %v262
  %v264 = vadd.f32 %v253, %v263
  %v265 = vld [vmem:[%s6 + $0x3] sm:$0x1]
  %266 = vset.pattern.permute.xlu0 3
  %267 = vperm.xlu0 %266, %v223
  %v268 = vpop.permute.xlu0 %267
  %v270 = vlaneseq
  %v271 = vshrl.u32 %v270, 7
  %v272 = vsub.s32 0, %v271
  %v273 = vrot.slane %v265, %v272
  %v274 = vmul.f32 %v268, %v273
  %v275 = vadd.f32 %v264, %v274
  %v276 = vld [vmem:[%s6 + $0x4] sm:$0x1]
  %277 = vset.pattern.permute.xlu0 4
  %278 = vperm.xlu0 %277, %v223
  %v279 = vpop.permute.xlu0 %278
  %v281 = vlaneseq
  %v282 = vshrl.u32 %v281, 7
  %v283 = vsub.s32 0, %v282
  %v284 = vrot.slane %v276, %v283
  %v285 = vmul.f32 %v279, %v284
  %v286 = vadd.f32 %v275, %v285
  %v287 = vld [vmem:[%s6 + $0x5] sm:$0x1]
  %288 = vset.pattern.permute.xlu0 5
  %289 = vperm.xlu0 %288, %v223
  %v290 = vpop.permute.xlu0 %289
  %v292 = vlaneseq
  %v293 = vshrl.u32 %v292, 7
  %v294 = vsub.s32 0, %v293
  %v295 = vrot.slane %v287, %v294
  %v296 = vmul.f32 %v290, %v295
  %v297 = vadd.f32 %v286, %v296
  %v298 = vld [vmem:[%s6 + $0x6] sm:$0x1]
  %299 = vset.pattern.permute.xlu0 6
  %300 = vperm.xlu0 %299, %v223
  %v301 = vpop.permute.xlu0 %300
  %v303 = vlaneseq
  %v304 = vshrl.u32 %v303, 7
  %v305 = vsub.s32 0, %v304
  %v306 = vrot.slane %v298, %v305
  %v307 = vmul.f32 %v301, %v306
  %v308 = vadd.f32 %v297, %v307
  %v309 = vld [vmem:[%s6 + $0x7] sm:$0x1]
  %310 = vset.pattern.permute.xlu0 7
  %311 = vperm.xlu0 %310, %v223
  %v312 = vpop.permute.xlu0 %311
  %v314 = vlaneseq
  %v315 = vshrl.u32 %v314, 7
  %v316 = vsub.s32 0, %v315
  %v317 = vrot.slane %v309, %v316
  %v318 = vmul.f32 %v312, %v317
  %v319 = vadd.f32 %v308, %v318
  %v320 = vld [vmem:[%s6 + $0x8] sm:$0x1]
  %321 = vset.pattern.permute.xlu0 8
  %322 = vperm.xlu0 %321, %v223
  %v323 = vpop.permute.xlu0 %322
  %v325 = vlaneseq
  %v326 = vshrl.u32 %v325, 7
  %v327 = vsub.s32 0, %v326
  %v328 = vrot.slane %v320, %v327
  %v329 = vmul.f32 %v323, %v328
  %v330 = vadd.f32 %v319, %v329
  %v331 = vld [vmem:[%s6 + $0x9] sm:$0x1]
  %332 = vset.pattern.permute.xlu0 9
  %333 = vperm.xlu0 %332, %v223
  %v334 = vpop.permute.xlu0 %333
  %v336 = vlaneseq
  %v337 = vshrl.u32 %v336, 7
  %v338 = vsub.s32 0, %v337
  %v339 = vrot.slane %v331, %v338
  %v340 = vmul.f32 %v334, %v339
  %v341 = vadd.f32 %v330, %v340
  %v342 = vld [vmem:[%s6 + $0xa] sm:$0x1]
  %343 = vset.pattern.permute.xlu0 10
  %344 = vperm.xlu0 %343, %v223
  %v345 = vpop.permute.xlu0 %344
  %v347 = vlaneseq
  %v348 = vshrl.u32 %v347, 7
  %v349 = vsub.s32 0, %v348
  %v350 = vrot.slane %v342, %v349
  %v351 = vmul.f32 %v345, %v350
  %v352 = vadd.f32 %v341, %v351
  %v353 = vld [vmem:[%s6 + $0xb] sm:$0x1]
  %354 = vset.pattern.permute.xlu0 11
  %355 = vperm.xlu0 %354, %v223
  %v356 = vpop.permute.xlu0 %355
  %v358 = vlaneseq
  %v359 = vshrl.u32 %v358, 7
  %v360 = vsub.s32 0, %v359
  %v361 = vrot.slane %v353, %v360
  %v362 = vmul.f32 %v356, %v361
  %v363 = vadd.f32 %v352, %v362
  %364 = vst [vmem:[%s8] sm:$0xff] %v363
  // Predicated region
  $region34: #{mlp_forward.1} parent=0 // pred_check
    _
  $region35: #{mlp_forward.1} parent=0 // pred_check_branch
    %366 = sbr.rel (0) target = $region37
  $region36: #{mlp_forward.1} parent=0 // pred_region
    _
  $region37: #{mlp_forward.1} parent=0 // pred_fallthru
    _
  // Predicated region
  $region38: #{mlp_forward.1} parent=0 // pred_check
    _
  $region39: #{mlp_forward.1} parent=0 // pred_check_branch
    %368 = sbr.rel (0) target = $region41
  $region40: #{mlp_forward.1} parent=0 // pred_region
    _
  $region41: #{mlp_forward.1} parent=0 // pred_fallthru
    _

</llo_original>
